<compile_context>
chip_gen: v5e
topology: v5e:2x2
jax: 0.10.0
libtpu: 0.0.40
codegen_flags: <defaults>
</compile_context>

<pallas_src>
import functools

import numpy as np
import jax
import jax.numpy as jnp
from jax.experimental import pallas as pl
from jax.experimental.pallas import tpu as pltpu


LANE = 128     # TPU lane width: hidden feature dims padded to multiples of this
SUBLANE = 8    # f32 sublane granularity for the batch (second-to-last) dim


def _round_up(x, m):
    return ((x + m - 1) // m) * m


# ----------------------------------------------------------------------------
# Deterministic weight construction (numpy, mirrors the PyTorch module's init)
# ----------------------------------------------------------------------------
def generate_weight_matrix(m, n, l_max, l_min, s=0.8):
    if m == n:
        S = np.eye(n) * (l_max - (l_max - l_min) * s)
    if m > n:
        S = np.vstack((np.eye(n) * (l_max - (l_max - l_min) * s),
                       np.zeros((m - n, n))))
    if n > m:
        S = np.hstack((np.eye(m) * (l_max - (l_max - l_min) * s),
                       np.zeros((m, n - m))))
    us = [np.random.randn(m, 1) for _ in range(m)]
    for i in range(1, m):
        for u in us[:i]:
            us[i] = us[i] - u @ u.T @ us[i] / np.linalg.norm(u) ** 2
    U = np.hstack(us)
    vs = [np.random.randn(n, 1) for _ in range(n)]
    for i in range(1, n):
        for v in vs[:i]:
            vs[i] = vs[i] - v @ v.T @ vs[i] / np.linalg.norm(v) ** 2
    V = np.hstack(vs)
    return U.T @ S @ V


def build_dissipative_params(input_units, hidden_units, output_units, seed=0):
    """Returns list of (W (out,in), b (out,)) exactly as dissipative_nn.set_weights."""
    np.random.seed(seed)  # deterministic, in-script (synthetic init)
    dims = [input_units] + list(hidden_units) + [output_units]
    l_min, l_max = 0.01, 0.02
    params = []
    for n_in, n_out in zip(dims[:-1], dims[1:]):
        s = 0.8 / (n_in * n_out)
        W = generate_weight_matrix(n_out, n_in, l_max, l_min, s)
        b = np.zeros(n_out)
        params.append((W.astype(np.float32), b.astype(np.float32)))
    return params


def prepare_padded_params(params):
    """One-time layout work (hoisted out of the forward pass).

    Transpose torch-layout (out,in) weights to (in,out). Hidden feature dims
    are zero-padded to 128 lanes for dense MXU tiles, but:
      * the first layer keeps its true K (matches the unpadded input width),
      * the last layer keeps its true N (kernel emits the real output width).
    Zero padding stays exact: padded hidden features get bias 0 -> ReLU(0)=0,
    which multiplies zero-padded weight rows downstream.
    """
    n_layers = len(params)
    padded = []
    for li, (W, b) in enumerate(params):
        out_f, in_f = W.shape
        in_p = in_f if li == 0 else _round_up(in_f, LANE)
        out_p = out_f if li == n_layers - 1 else _round_up(out_f, LANE)
        wt = np.zeros((in_p, out_p), np.float32)
        wt[:in_f, :out_f] = W.T
        bp_ = np.zeros((1, out_p), np.float32)
        bp_[0, :out_f] = b
        # Exactness invariant for the zero-padding argument (ReLU(0)=0).
        assert np.all(bp_[0, out_f:] == 0.0)
        padded.append((jnp.asarray(wt), jnp.asarray(bp_)))
    return padded


def _choose_batch_tiling(batch):
    """Pick (padded_batch, batch_tile).

    * Gridless single tile when the whole (sublane-padded) batch is <= 512 rows.
    * Otherwise: large tiles (256-1024 rows) to amortize the ~0.35us/step grid
      overhead, chosen to minimize batch-padding waste, preferring an even
      number of steps (v7x 2-TC 'parallel' split) and then the largest tile.
    """
    bp = _round_up(batch, SUBLANE)
    if bp <= 512:
        return bp, bp
    best_tb, best_key = None, None
    for tb in range(min(bp, 1024), 255, -SUBLANE):
        steps = -(-bp // tb)
        if steps < 2:
            continue
        waste = steps * tb - bp
        key = (waste, steps % 2, -tb)   # min waste, prefer even steps, largest tile
        if best_key is None or key < best_key:
            best_key, best_tb = key, tb
    return _round_up(bp, best_tb), best_tb


# ----------------------------------------------------------------------------
# Fused MLP kernel: all layers in one pallas_call (activations stay in VMEM)
# ----------------------------------------------------------------------------
def _fused_mlp_kernel(*refs):
    x_ref, *wb_refs, o_ref = refs
    n_layers = len(wb_refs) // 2
    h = x_ref[...]                                     # (tb, in_f) f32
    for li in range(n_layers):
        w = wb_refs[2 * li][...]                       # (K, N) for this layer
        b = wb_refs[2 * li + 1][...]                   # (1, N)
        # Default (reduced) MXU matmul precision is intentional; weights are
        # O(1e-2) so f32-accumulated default precision is well within 1e-5.
        h = jnp.dot(h, w, preferred_element_type=jnp.float32) + b
        if li < n_layers - 1:
            h = jnp.maximum(h, 0.0)                    # ReLU on hidden layers
    o_ref[...] = h.astype(o_ref.dtype)                 # true output width store


@jax.jit
def dissipative_nn_forward(x, padded_params):
    """x: (batch, input_units) f32. Returns (batch, output_units)."""
    batch, in_f = x.shape
    out_f = padded_params[-1][0].shape[1]              # true output width
    bp, tb = _choose_batch_tiling(batch)

    x = x.astype(jnp.float32)
    if bp != batch:
        xp = jnp.zeros((bp, in_f), jnp.float32).at[:batch].set(x)
    else:
        xp = x                                          # no pad kernel needed

    flat_wb = []
    for wt, b2 in padded_params:
        flat_wb += [wt, b2]

    flops = 2 * bp * sum(int(w.shape[0]) * int(w.shape[1])
                         for w, _ in padded_params)
    bytes_accessed = 4 * (bp * in_f + bp * out_f) + sum(
        4 * (int(np.prod(w.shape)) + int(np.prod(b.shape)))
        for w, b in padded_params)
    ce = pl.CostEstimate(flops=flops, transcendentals=0,
                         bytes_accessed=bytes_accessed)

    if bp == tb:
        # Single tile: no grid, no index_map plumbing — whole arrays in VMEM.
        out = pl.pallas_call(
            _fused_mlp_kernel,
            out_shape=jax.ShapeDtypeStruct((bp, out_f), jnp.float32),
            cost_estimate=ce,
        )(xp, *flat_wb)
    else:
        # Real batch grid; weights/biases are broadcast (same block every step)
        # and single-buffered since their index_map is constant.
        in_specs = [pl.BlockSpec((tb, in_f), lambda i: (i, 0))]
        for wt, b2 in padded_params:
            in_specs.append(pl.BlockSpec(wt.shape, lambda i: (0, 0),
                                         pipeline_mode=pl.Buffered(1)))
            in_specs.append(pl.BlockSpec(b2.shape, lambda i: (0, 0),
                                         pipeline_mode=pl.Buffered(1)))
        out = pl.pallas_call(
            _fused_mlp_kernel,
            out_shape=jax.ShapeDtypeStruct((bp, out_f), jnp.float32),
            grid=(bp // tb,),
            in_specs=in_specs,
            out_specs=pl.BlockSpec((tb, out_f), lambda i: (i, 0)),
            compiler_params=pltpu.CompilerParams(
                dimension_semantics=("parallel",)),
            cost_estimate=ce,
        )(xp, *flat_wb)

    return out if bp == batch else out[:batch]


# Pure-JAX reference for sanity checking (uses the original torch-layout params)
def _reference_forward(x, params):
    x = jnp.asarray(x, jnp.float32)
    for W, b in params[:-1]:
        x = jnp.maximum(x @ jnp.asarray(W).T + jnp.asarray(b), 0.0)
    W, b = params[-1]
    return x @ jnp.asarray(W).T + jnp.asarray(b)


if __name__ == "__main__":
    input_units = 16
    hidden_units = [32, 32]
    output_units = 8
    batch = 8

    params = build_dissipative_params(input_units, hidden_units, output_units)
    padded_params = prepare_padded_params(params)   # layout work hoisted to init

    key = jax.random.PRNGKey(0)
    x = jax.random.normal(key, (batch, input_units), dtype=jnp.float32)

    out = dissipative_nn_forward(x, padded_params)
    out = jax.block_until_ready(out)

    ref = jax.block_until_ready(_reference_forward(x, params))
    assert out.shape == (batch, output_units)
    np.testing.assert_allclose(np.asarray(out), np.asarray(ref),
                               rtol=1e-5, atol=1e-5)

    print("KERNEL_OK")
</pallas_src>

<mosaic_0001>
module attributes {stable_mosaic.version = 11 : i64} {
  func.func @_fused_mlp_kernel(%arg0: memref<8x16xf32, #tpu.memory_space<vmem>>, %arg1: memref<16x128xf32, #tpu.memory_space<vmem>>, %arg2: memref<1x128xf32, #tpu.memory_space<vmem>>, %arg3: memref<128x128xf32, #tpu.memory_space<vmem>>, %arg4: memref<1x128xf32, #tpu.memory_space<vmem>>, %arg5: memref<128x8xf32, #tpu.memory_space<vmem>>, %arg6: memref<1x8xf32, #tpu.memory_space<vmem>>, %arg7: memref<8x8xf32, #tpu.memory_space<vmem>>) attributes {dimension_semantics = [], scalar_prefetch = 0 : i64, scratch_operands = 0 : i64, tpu.core_type = #tpu.core_type<tc>} {
    %c0 = arith.constant 0 : index
    %c0_0 = arith.constant 0 : index
    %0 = vector.load %arg0[%c0, %c0_0] : memref<8x16xf32, #tpu.memory_space<vmem>>, vector<8x16xf32>
    %c0_1 = arith.constant 0 : index
    %c0_2 = arith.constant 0 : index
    %1 = vector.load %arg1[%c0_1, %c0_2] : memref<16x128xf32, #tpu.memory_space<vmem>>, vector<16x128xf32>
    %c0_3 = arith.constant 0 : index
    %c0_4 = arith.constant 0 : index
    %2 = vector.load %arg2[%c0_3, %c0_4] : memref<1x128xf32, #tpu.memory_space<vmem>>, vector<1x128xf32>
    %cst = arith.constant dense<0.000000e+00> : vector<8x128xf32>
    %3 = tpu.matmul %0, %1, %cst {dimension_numbers = #tpu.dot_dimension_numbers<[1], [0], [0], [1], [0, 0, 1, 1], [], []>} : vector<8x16xf32>, vector<16x128xf32>, vector<8x128xf32> -> vector<8x128xf32>
    %4 = vector.broadcast %2 : vector<1x128xf32> to vector<8x128xf32>
    %5 = arith.addf %3, %4 : vector<8x128xf32>
    %cst_5 = arith.constant 0.000000e+00 : f32
    %6 = vector.broadcast %cst_5 : f32 to vector<8x128xf32>
    %7 = arith.maximumf %5, %6 : vector<8x128xf32>
    %c0_6 = arith.constant 0 : index
    %c0_7 = arith.constant 0 : index
    %8 = vector.load %arg3[%c0_6, %c0_7] : memref<128x128xf32, #tpu.memory_space<vmem>>, vector<128x128xf32>
    %c0_8 = arith.constant 0 : index
    %c0_9 = arith.constant 0 : index
    %9 = vector.load %arg4[%c0_8, %c0_9] : memref<1x128xf32, #tpu.memory_space<vmem>>, vector<1x128xf32>
    %cst_10 = arith.constant dense<0.000000e+00> : vector<8x128xf32>
    %10 = tpu.matmul %7, %8, %cst_10 {dimension_numbers = #tpu.dot_dimension_numbers<[1], [0], [0], [1], [0, 0, 1, 1], [], []>} : vector<8x128xf32>, vector<128x128xf32>, vector<8x128xf32> -> vector<8x128xf32>
    %11 = vector.broadcast %9 : vector<1x128xf32> to vector<8x128xf32>
    %12 = arith.addf %10, %11 : vector<8x128xf32>
    %cst_11 = arith.constant 0.000000e+00 : f32
    %13 = vector.broadcast %cst_11 : f32 to vector<8x128xf32>
    %14 = arith.maximumf %12, %13 : vector<8x128xf32>
    %c0_12 = arith.constant 0 : index
    %c0_13 = arith.constant 0 : index
    %15 = vector.load %arg5[%c0_12, %c0_13] : memref<128x8xf32, #tpu.memory_space<vmem>>, vector<128x8xf32>
    %c0_14 = arith.constant 0 : index
    %c0_15 = arith.constant 0 : index
    %16 = vector.load %arg6[%c0_14, %c0_15] : memref<1x8xf32, #tpu.memory_space<vmem>>, vector<1x8xf32>
    %cst_16 = arith.constant dense<0.000000e+00> : vector<8x8xf32>
    %17 = tpu.matmul %14, %15, %cst_16 {dimension_numbers = #tpu.dot_dimension_numbers<[1], [0], [0], [1], [0, 0, 1, 1], [], []>} : vector<8x128xf32>, vector<128x8xf32>, vector<8x8xf32> -> vector<8x8xf32>
    %18 = vector.broadcast %16 : vector<1x8xf32> to vector<8x8xf32>
    %19 = arith.addf %17, %18 : vector<8x8xf32>
    %c0_17 = arith.constant 0 : index
    %c0_18 = arith.constant 0 : index
    %20 = vector.load %arg7[%c0_17, %c0_18] : memref<8x8xf32, #tpu.memory_space<vmem>>, vector<8x8xf32>
    tpu.vector_store %arg7[%c0_17, %c0_18], %19 {strides = array<i32>} : memref<8x8xf32, #tpu.memory_space<vmem>>, vector<8x8xf32>,
    return
  }
}

</mosaic_0001>

<llo_original>
// kernel: dissipative_nn_forward.1
$region0: #{dissipative_nn_forward.1}
  #allocation0 [shape = 'u32[]', space=smem, size = 0x4, offset = 0x4, fixed_abs, tag = 'smem constant byte address 0x4 - core index']
  #allocation1 [shape = 'u32[72,128]{1,0:T(1,128)}', space=vmem, size = 0x9000, scoped, tag = 'internal scratch']
  %s0 = inlined_call_operand.vmem [shape: f32[8,16], index: 0, kind: input, shape index: {}]
  %s1 = inlined_call_operand.hbm [shape: f32[16,128], index: 1, kind: input, shape index: {}]
  %s2 = inlined_call_operand.vmem [shape: f32[1,128], index: 2, kind: input, shape index: {}]
  %s3 = inlined_call_operand.vmem [shape: f32[128,128], index: 3, kind: input, shape index: {}]
  %s4 = inlined_call_operand.vmem [shape: f32[1,128], index: 4, kind: input, shape index: {}]
  %s5 = inlined_call_operand.vmem [shape: f32[128,8], index: 5, kind: input, shape index: {}]
  %s6 = inlined_call_operand.vmem [shape: f32[1,8], index: 6, kind: input, shape index: {}]
  %s7 = inlined_call_operand.hbm [shape: f32[8,8], index: 7, kind: output, shape index: {}]
  %s8 = sld [smem:[#allocation0]]
  $region42: #{dissipative_nn_forward.1} parent=0
    _
  %s10 = ssub.s32 1, %s8
  %s11 = scalar_select 0, %s10, %s8
  $region1: #{dissipative_nn_forward.1} parent=0
    #allocation2 [shape = 'u8[8192]{0}', space=vmem, size = 0x2000, scoped, tag = 'input window, operand 1, single buffered']
    #allocation3 [shape = 's32[1]{0}', space=sflag, size = 0x4, scoped, tag = 'scoped memory for dissipative_nn_forward.1']
    #allocation4 [shape = 's32[1]{0}', space=sflag, size = 0x4, scoped, tag = 'scoped memory for dissipative_nn_forward.1']
    #allocation5 [shape = 'u8[4096]{0}', space=vmem, size = 0x1000, scoped, tag = 'output window, operand 0, single buffered']
    %12 = vsyncpa [#allocation3], 0
    %13 = vsyncpa [#allocation4], 0
    // Predicated region
    $region2: #{dissipative_nn_forward.1} parent=1 // pred_check
      _
    $region3: #{dissipative_nn_forward.1} parent=1 // pred_check_branch
      %15 = sbr.rel (0) target = $region5
    $region4: #{dissipative_nn_forward.1} parent=1 // pred_region
      _
    $region5: #{dissipative_nn_forward.1} parent=1 // pred_fallthru
      _
    // Predicated region
    $region6: #{dissipative_nn_forward.1} parent=1 // pred_check
      _
    $region7: #{dissipative_nn_forward.1} parent=1 // pred_check_branch
      %17 = sbr.rel (0) target = $region9
    $region8: #{dissipative_nn_forward.1} parent=1 // pred_region
      %19 = vsyncadd [#allocation3], 0
      %s20 = sshll.u32 %s1, 4
      %s21 = int_to_ptr.hbm [resolvable:$true] %s20
      %s22 = sshll.u32 [#allocation2], 4
      %s23 = int_to_ptr.vmem [resolvable:$true] %s22
      %28 = dma.hbm_to_vmem [thread:$0]  %s21, 256, %s23, [#allocation3], 128, 128, 8
    $region9: #{dissipative_nn_forward.1} parent=1 // pred_fallthru
      _
    // Predicated region
    $region10: #{dissipative_nn_forward.1} parent=1 // pred_check
      _
    $region11: #{dissipative_nn_forward.1} parent=1 // pred_check_branch
      %30 = sbr.rel (0) target = $region13
    $region12: #{dissipative_nn_forward.1} parent=1 // pred_region
      _
    $region13: #{dissipative_nn_forward.1} parent=1 // pred_fallthru
      _
    // Predicated region
    $region14: #{dissipative_nn_forward.1} parent=1 // pred_check
      _
    $region15: #{dissipative_nn_forward.1} parent=1 // pred_check_branch
      %32 = sbr.rel (0) target = $region17
    $region16: #{dissipative_nn_forward.1} parent=1 // pred_region
      _
    $region17: #{dissipative_nn_forward.1} parent=1 // pred_fallthru
      _
    // Predicated region
    $region18: #{dissipative_nn_forward.1} parent=1 // pred_check
      _
    $region19: #{dissipative_nn_forward.1} parent=1 // pred_check_branch
      %34 = sbr.rel (0) target = $region21
    $region20: #{dissipative_nn_forward.1} parent=1 // pred_region
      _
    $region21: #{dissipative_nn_forward.1} parent=1 // pred_fallthru
      _
    // Predicated region
    $region22: #{dissipative_nn_forward.1} parent=1 // pred_check
      _
    $region23: #{dissipative_nn_forward.1} parent=1 // pred_check_branch
      %36 = sbr.rel (0) target = $region25
    $region24: #{dissipative_nn_forward.1} parent=1 // pred_region
      _
    $region25: #{dissipative_nn_forward.1} parent=1 // pred_fallthru
      _
    // Predicated region
    $region26: #{dissipative_nn_forward.1} parent=1 // pred_check
      _
    $region27: #{dissipative_nn_forward.1} parent=1 // pred_check_branch
      %38 = sbr.rel (0) target = $region29
    $region28: #{dissipative_nn_forward.1} parent=1 // pred_region
      _
    $region29: #{dissipative_nn_forward.1} parent=1 // pred_fallthru
      _
    // Predicated region
    $region30: #{dissipative_nn_forward.1} parent=1 // pred_check
      _
    $region31: #{dissipative_nn_forward.1} parent=1 // pred_check_branch
      %40 = sbr.rel (0) target = $region33
    $region32: #{dissipative_nn_forward.1} parent=1 // pred_region
      %42 = dma.done [#allocation3], 256
    $region33: #{dissipative_nn_forward.1} parent=1 // pred_fallthru
      _
    %v43 = vld [vmem:[%s0] sm:$0xff]
    %v44 = vld [vmem:[#allocation2] sm:$0xff]
    %v45 = vld [vmem:[#allocation2 + $0x8] sm:$0xff]
    %v46 = vld [vmem:[%s2] sm:$0x1]
    %v48 = vperm.slane %v46, 0
    %vm50 = vcmask 130048
    %v52 = vsel %vm50, %v43, 0
    %54 = vmatpush.msra.mxu0 0.0
    %55 = vmatpush.msra.mxu0 0.0
    %56 = vmatpush.msra.mxu0 0.0
    %57 = vmatpush.msra.mxu0 0.0
    %58 = vmatpush.msra.mxu0 0.0
    %59 = vmatpush.msra.mxu0 0.0
    %60 = vmatpush.msra.mxu0 0.0
    %61 = vmatpush.msra.mxu0 0.0
    %62 = vmatpush.msra.mxu0 0.0
    %63 = vmatpush.msra.mxu0 0.0
    %64 = vmatpush.msra.mxu0 0.0
    %65 = vmatpush.msra.mxu0 0.0
    %66 = vmatpush.msra.mxu0 0.0
    %67 = vmatpush.msra.mxu0 0.0
    %68 = vmatpush.msra.mxu0 %v45
    %69 = vmatpush.msra.mxu0 %v44
    %70 = vmatmul.f32.gmra.mxu0 %v52
    %v71 = vpop.f32.mrf.mxu0
    %v72 = vadd.f32 %v48, %v71
    %73 = vdwg.mxu0
    %v74 = vmax.f32 %v72, 0.0
    %v75 = vld [vmem:[%s3] sm:$0xff]
    %v76 = vld [vmem:[%s3 + $0x8] sm:$0xff]
    %v77 = vld [vmem:[%s3 + $0x10] sm:$0xff]
    %v78 = vld [vmem:[%s3 + $0x18] sm:$0xff]
    %v79 = vld [vmem:[%s3 + $0x20] sm:$0xff]
    %v80 = vld [vmem:[%s3 + $0x28] sm:$0xff]
    %v81 = vld [vmem:[%s3 + $0x30] sm:$0xff]
    %v82 = vld [vmem:[%s3 + $0x38] sm:$0xff]
    %v83 = vld [vmem:[%s3 + $0x40] sm:$0xff]
    %v84 = vld [vmem:[%s3 + $0x48] sm:$0xff]
    %v85 = vld [vmem:[%s3 + $0x50] sm:$0xff]
    %v86 = vld [vmem:[%s3 + $0x58] sm:$0xff]
    %v87 = vld [vmem:[%s3 + $0x60] sm:$0xff]
    %v88 = vld [vmem:[%s3 + $0x68] sm:$0xff]
    %v89 = vld [vmem:[%s3 + $0x70] sm:$0xff]
    %v90 = vld [vmem:[%s3 + $0x78] sm:$0xff]
    %v91 = vld [vmem:[%s4] sm:$0x1]
    %v93 = vperm.slane %v91, 0
    %95 = vmatpush.msra.mxu0 %v90
    %96 = vmatpush.msra.mxu0 %v89
    %97 = vmatpush.msra.mxu0 %v88
    %98 = vmatpush.msra.mxu0 %v87
    %99 = vmatpush.msra.mxu0 %v86
    %100 = vmatpush.msra.mxu0 %v85
    %101 = vmatpush.msra.mxu0 %v84
    %102 = vmatpush.msra.mxu0 %v83
    %103 = vmatpush.msra.mxu0 %v82
    %104 = vmatpush.msra.mxu0 %v81
    %105 = vmatpush.msra.mxu0 %v80
    %106 = vmatpush.msra.mxu0 %v79
    %107 = vmatpush.msra.mxu0 %v78
    %108 = vmatpush.msra.mxu0 %v77
    %109 = vmatpush.msra.mxu0 %v76
    %110 = vmatpush.msra.mxu0 %v75
    %111 = vmatmul.f32.gmra.mxu0 %v74
    %v112 = vpop.f32.mrf.mxu0
    %v113 = vadd.f32 %v93, %v112
    %114 = vdwg.mxu0
    %v115 = vmax.f32 %v113, 0.0
    %v116 = vld [vmem:[%s5] sm:$0xff]
    %v117 = vld [vmem:[%s5 + $0x8] sm:$0xff]
    %v118 = vld [vmem:[%s5 + $0x10] sm:$0xff]
    %v119 = vld [vmem:[%s5 + $0x18] sm:$0xff]
    %v120 = vld [vmem:[%s5 + $0x20] sm:$0xff]
    %v121 = vld [vmem:[%s5 + $0x28] sm:$0xff]
    %v122 = vld [vmem:[%s5 + $0x30] sm:$0xff]
    %v123 = vld [vmem:[%s5 + $0x38] sm:$0xff]
    %v124 = vld [vmem:[%s5 + $0x40] sm:$0xff]
    %v125 = vld [vmem:[%s5 + $0x48] sm:$0xff]
    %v126 = vld [vmem:[%s5 + $0x50] sm:$0xff]
    %v127 = vld [vmem:[%s5 + $0x58] sm:$0xff]
    %v128 = vld [vmem:[%s5 + $0x60] sm:$0xff]
    %v129 = vld [vmem:[%s5 + $0x68] sm:$0xff]
    %v130 = vld [vmem:[%s5 + $0x70] sm:$0xff]
    %v131 = vld [vmem:[%s5 + $0x78] sm:$0xff]
    %v132 = vld [vmem:[%s6] sm:$0x1]
    %v134 = vperm.slane %v132, 0
    %136 = vmatpush.msra.mxu0 %v131
    %137 = vmatpush.msra.mxu0 %v130
    %138 = vmatpush.msra.mxu0 %v129
    %139 = vmatpush.msra.mxu0 %v128
    %140 = vmatpush.msra.mxu0 %v127
    %141 = vmatpush.msra.mxu0 %v126
    %142 = vmatpush.msra.mxu0 %v125
    %143 = vmatpush.msra.mxu0 %v124
    %144 = vmatpush.msra.mxu0 %v123
    %145 = vmatpush.msra.mxu0 %v122
    %146 = vmatpush.msra.mxu0 %v121
    %147 = vmatpush.msra.mxu0 %v120
    %148 = vmatpush.msra.mxu0 %v119
    %149 = vmatpush.msra.mxu0 %v118
    %150 = vmatpush.msra.mxu0 %v117
    %151 = vmatpush.msra.mxu0 %v116
    %152 = vmatmul.f32.gmra.mxu0 %v115
    %v153 = vpop.f32.mrf.mxu0
    %v154 = vadd.f32 %v134, %v153
    %155 = vdwg.mxu0
    %vm156 = vcmask 64512
    %157 = vst.msk [vmem:[#allocation5] sm:$0xff] %vm156, %v154
    // Predicated region
    $region34: #{dissipative_nn_forward.1} parent=1 // pred_check
      _
    $region35: #{dissipative_nn_forward.1} parent=1 // pred_check_branch
      %159 = sbr.rel (0) target = $region37
    $region36: #{dissipative_nn_forward.1} parent=1 // pred_region
      %161 = vsyncadd [#allocation4], 0
      %s163 = sshll.u32 [#allocation5], 4
      %s164 = int_to_ptr.vmem [resolvable:$true] %s163
      %s165 = sshll.u32 %s7, 4
      %s166 = int_to_ptr.hbm [resolvable:$true] %s165
      %168 = dma.vmem_to_hbm [thread:$0]  %s164, 128, %s166, [#allocation4]
    $region37: #{dissipative_nn_forward.1} parent=1 // pred_fallthru
      _
    // Predicated region
    $region38: #{dissipative_nn_forward.1} parent=1 // pred_check
      _
    $region39: #{dissipative_nn_forward.1} parent=1 // pred_check_branch
      %170 = sbr.rel (0) target = $region41
    $region40: #{dissipative_nn_forward.1} parent=1 // pred_region
      %172 = dma.done [#allocation4], 128
    $region41: #{dissipative_nn_forward.1} parent=1 // pred_fallthru
      _
    %173 = vsyncpa [#allocation3], 1
    %174 = vsyncpa [#allocation4], 1

</llo_original>
